<compile_context>
chip_gen: v5e
topology: v5e:2x2
jax: 0.10.0
libtpu: 0.0.40
codegen_flags: <defaults>
</compile_context>

<pallas_src>
import numpy as np
import jax
import jax.numpy as jnp
from jax.experimental import pallas as pl
from jax.experimental.pallas import tpu as pltpu

N, M = 16, 20  # matches the torch example's input length (20)


# ---------------- Pallas kernels (one per branch) ----------------

def _mv_kernel(w_ref, x_ref, out_ref):
    # w_ref: (N, M) f32   x_ref: (1, M) f32   out_ref: (N, 1) f32
    # VPU broadcast multiply + XLU lane reduction (exact f32 matvec).
    out_ref[...] = jnp.sum(w_ref[...] * x_ref[...], axis=1, keepdims=True)


def _add_kernel(w_ref, x_ref, out_ref):
    # w_ref: (N, M) f32   x_ref: (1, M) f32   out_ref: (N, M) f32
    # Row broadcast of x over the N sublanes.
    out_ref[...] = w_ref[...] + x_ref[...]


# ---------------- jitted device paths (one launch each) ----------------

def _vmem_spec():
    # Whole-array block resident in VMEM; no grid, no pipeline machinery.
    return pl.BlockSpec(memory_space=pltpu.MemorySpace.VMEM)


@jax.jit
def _mv_forward(weight, x):
    x2 = x.reshape(1, M).astype(jnp.float32)
    mv = pl.pallas_call(
        _mv_kernel,
        out_shape=jax.ShapeDtypeStruct((N, 1), jnp.float32),
        in_specs=[_vmem_spec(), _vmem_spec()],
        out_specs=_vmem_spec(),
    )(weight, x2)
    return mv.reshape(N)


@jax.jit
def _add_forward(weight, x):
    x2 = x.reshape(1, M).astype(jnp.float32)
    return pl.pallas_call(
        _add_kernel,
        out_shape=jax.ShapeDtypeStruct((N, M), jnp.float32),
        in_specs=[_vmem_spec(), _vmem_spec()],
        out_specs=_vmem_spec(),
    )(weight, x2)


def forward(weight, x):
    # The two branches have different output shapes, so the branch must be
    # decided at dispatch time.  Evaluate the predicate on the host (cheap for
    # host arrays; a single tiny D2H pull of the M-vector for device arrays),
    # then launch only the kernel for the taken branch.  No blocking sync on
    # any kernel output.
    if float(np.asarray(x).sum()) > 0.0:
        return _mv_forward(weight, x)       # (N,)
    return _add_forward(weight, x)          # (N, M)


if __name__ == "__main__":
    key = jax.random.PRNGKey(0)
    k_w, k_x = jax.random.split(key)

    # deterministic parameter init: torch.rand(N, M) ~ uniform[0, 1)
    weight = jax.random.uniform(k_w, (N, M), dtype=jnp.float32)
    # input: torch.randn-like vector of length M
    x = jax.random.normal(k_x, (M,), dtype=jnp.float32)

    # run forward once with the generated input (whichever branch it selects)
    out = jax.block_until_ready(forward(weight, x))
    # exercise the other branch as well (flip the sign of x)
    out_other = jax.block_until_ready(forward(weight, -x))

    # correctness checks against plain-JAX reference, both branches
    pos_x = x if float(np.asarray(x).sum()) > 0 else -x
    neg_x = -pos_x
    ref_mv = weight @ pos_x
    ref_add = weight + neg_x
    got_mv = jax.block_until_ready(forward(weight, pos_x))
    got_add = jax.block_until_ready(forward(weight, neg_x))
    assert got_mv.shape == (N,) and got_add.shape == (N, M)
    assert jnp.allclose(got_mv, ref_mv, atol=1e-5, rtol=1e-5)
    assert jnp.allclose(got_add, ref_add, atol=1e-6, rtol=1e-6)

    print("KERNEL_OK")
</pallas_src>

<mosaic_0001>
module attributes {stable_mosaic.version = 11 : i64} {
  func.func @_add_kernel(%arg0: memref<16x20xf32, #tpu.memory_space<vmem>>, %arg1: memref<1x20xf32, #tpu.memory_space<vmem>>, %arg2: memref<16x20xf32, #tpu.memory_space<vmem>>) attributes {dimension_semantics = [], scalar_prefetch = 0 : i64, scratch_operands = 0 : i64, tpu.core_type = #tpu.core_type<tc>} {
    %c0 = arith.constant 0 : index
    %c0_0 = arith.constant 0 : index
    %0 = vector.load %arg0[%c0, %c0_0] : memref<16x20xf32, #tpu.memory_space<vmem>>, vector<16x20xf32>
    %c0_1 = arith.constant 0 : index
    %c0_2 = arith.constant 0 : index
    %1 = vector.load %arg1[%c0_1, %c0_2] : memref<1x20xf32, #tpu.memory_space<vmem>>, vector<1x20xf32>
    %2 = vector.broadcast %1 : vector<1x20xf32> to vector<16x20xf32>
    %3 = arith.addf %0, %2 : vector<16x20xf32>
    %c0_3 = arith.constant 0 : index
    %c0_4 = arith.constant 0 : index
    %4 = vector.load %arg2[%c0_3, %c0_4] : memref<16x20xf32, #tpu.memory_space<vmem>>, vector<16x20xf32>
    tpu.vector_store %arg2[%c0_3, %c0_4], %3 {strides = array<i32>} : memref<16x20xf32, #tpu.memory_space<vmem>>, vector<16x20xf32>,
    return
  }
}

</mosaic_0001>

<llo_original>
// kernel: _add_forward.1
$region0: #{_add_forward.1}
  #allocation0 [shape = 'u32[]', space=smem, size = 0x4, offset = 0x4, fixed_abs, tag = 'smem constant byte address 0x4 - core index']
  #allocation1 [shape = 'u32[72,128]{1,0:T(1,128)}', space=vmem, size = 0x9000, scoped, tag = 'internal scratch']
  %s0 = inlined_call_operand.hbm [shape: f32[16,20], index: 0, kind: input, shape index: {}]
  %s1 = inlined_call_operand.vmem [shape: f32[1,20], index: 1, kind: input, shape index: {}]
  %s2 = inlined_call_operand.hbm [shape: f32[16,20], index: 2, kind: output, shape index: {}]
  %s3 = sld [smem:[#allocation0]]
  $region22: #{_add_forward.1} parent=0
    _
  %s5 = ssub.s32 1, %s3
  %s6 = scalar_select 0, %s5, %s3
  $region1: #{_add_forward.1} parent=0
    #allocation2 [shape = 'u8[8192]{0}', space=vmem, size = 0x2000, scoped, tag = 'input window, operand 0, single buffered']
    #allocation3 [shape = 's32[1]{0}', space=sflag, size = 0x4, scoped, tag = 'scoped memory for _add_forward.1']
    #allocation4 [shape = 's32[1]{0}', space=sflag, size = 0x4, scoped, tag = 'scoped memory for _add_forward.1']
    #allocation5 [shape = 'u8[8192]{0}', space=vmem, size = 0x2000, scoped, tag = 'output window, operand 0, single buffered']
    %7 = vsyncpa [#allocation3], 0
    %8 = vsyncpa [#allocation4], 0
    // Predicated region
    $region2: #{_add_forward.1} parent=1 // pred_check
      _
    $region3: #{_add_forward.1} parent=1 // pred_check_branch
      %10 = sbr.rel (0) target = $region5
    $region4: #{_add_forward.1} parent=1 // pred_region
      %12 = vsyncadd [#allocation3], 0
      %s13 = sshll.u32 %s0, 4
      %s14 = int_to_ptr.hbm [resolvable:$true] %s13
      %s15 = sshll.u32 [#allocation2], 4
      %s16 = int_to_ptr.vmem [resolvable:$true] %s15
      %21 = dma.hbm_to_vmem [thread:$0]  %s14, 256, %s16, [#allocation3], 128, 128, 8
    $region5: #{_add_forward.1} parent=1 // pred_fallthru
      _
    // Predicated region
    $region6: #{_add_forward.1} parent=1 // pred_check
      _
    $region7: #{_add_forward.1} parent=1 // pred_check_branch
      %23 = sbr.rel (0) target = $region9
    $region8: #{_add_forward.1} parent=1 // pred_region
      _
    $region9: #{_add_forward.1} parent=1 // pred_fallthru
      _
    // Predicated region
    $region10: #{_add_forward.1} parent=1 // pred_check
      _
    $region11: #{_add_forward.1} parent=1 // pred_check_branch
      %25 = sbr.rel (0) target = $region13
    $region12: #{_add_forward.1} parent=1 // pred_region
      %27 = dma.done [#allocation3], 256
    $region13: #{_add_forward.1} parent=1 // pred_fallthru
      _
    %v28 = vld [vmem:[#allocation2] sm:$0xff]
    %v29 = vld [vmem:[#allocation2 + $0x8] sm:$0xff]
    %v30 = vld [vmem:[%s1] sm:$0x1]
    %v32 = vperm.slane %v30, 0
    %v34 = vadd.f32 %v28, %v32
    %v35 = vadd.f32 %v29, %v32
    %vm36 = vcmask 162816
    %37 = vst.msk [vmem:[#allocation5] sm:$0xff] %vm36, %v34
    %38 = vst.msk [vmem:[#allocation5 + $0x8] sm:$0xff] %vm36, %v35
    // Predicated region
    $region14: #{_add_forward.1} parent=1 // pred_check
      _
    $region15: #{_add_forward.1} parent=1 // pred_check_branch
      %40 = sbr.rel (0) target = $region17
    $region16: #{_add_forward.1} parent=1 // pred_region
      %42 = vsyncadd [#allocation4], 0
      %s43 = sshll.u32 [#allocation5], 4
      %s44 = int_to_ptr.vmem [resolvable:$true] %s43
      %s45 = sshll.u32 %s2, 4
      %s46 = int_to_ptr.hbm [resolvable:$true] %s45
      %51 = dma.vmem_to_hbm [thread:$0]  %s44, 256, %s46, [#allocation4], 128, 128, 8
    $region17: #{_add_forward.1} parent=1 // pred_fallthru
      _
    // Predicated region
    $region18: #{_add_forward.1} parent=1 // pred_check
      _
    $region19: #{_add_forward.1} parent=1 // pred_check_branch
      %53 = sbr.rel (0) target = $region21
    $region20: #{_add_forward.1} parent=1 // pred_region
      %55 = dma.done [#allocation4], 256
    $region21: #{_add_forward.1} parent=1 // pred_fallthru
      _
    %56 = vsyncpa [#allocation3], 1
    %57 = vsyncpa [#allocation4], 1

</llo_original>
